<compile_context>
chip_gen: v5e
topology: v5e:2x2
jax: 0.10.0
libtpu: 0.0.40
codegen_flags: <defaults>
</compile_context>

<pallas_src>
import functools

import jax
import jax.numpy as jnp
from jax.experimental import pallas as pl
from jax.experimental.pallas import tpu as pltpu

TAU = 1.0      # soft-box temperature (config.temperature)
EPS = 1e-10    # volume clamp epsilon


def _log_side(side, bf16_eup):
    """log( softplus(side / TAU) * TAU + EPS ), numerically stable."""
    x = side / TAU if TAU != 1.0 else side
    if bf16_eup:
        # v6e/v7x bf16 EUP runs ~2x; the correction term is bounded by log(2) so
        # bf16 for the exp is plenty.  log1p / log stay in f32.
        corr = jnp.log1p(jnp.exp((-jnp.abs(x)).astype(jnp.bfloat16)).astype(jnp.float32))
    else:
        corr = jnp.log1p(jnp.exp(-jnp.abs(x)))
    sp = jnp.maximum(x, 0.0) + corr          # stable softplus
    if TAU != 1.0:
        sp = sp * TAU
    return jnp.log(sp + EPS)


def entailment_kernel(p_ref, c_ref, o_ref, *, dim, bf16_eup):
    # Blocks are contiguous (bt, 2*dim) tiles; split center/offset with a static
    # in-VMEM slice (free when dim % 128 == 0, a cheap lane-select otherwise).
    p = p_ref[...].astype(jnp.float32)
    c = c_ref[...].astype(jnp.float32)
    pc, po = p[:, :dim], p[:, dim:]
    cc, co = c[:, :dim], c[:, dim:]

    p_min, p_max = pc - po, pc + po
    c_min, c_max = cc - co, cc + co
    i_min = jnp.maximum(p_min, c_min)
    i_max = jnp.minimum(p_max, c_max)

    # Fused log-volume difference: one elementwise chain, one cross-lane reduce.
    diff = _log_side(i_max - i_min, bf16_eup) - _log_side(p_max - p_min, bf16_eup)
    total = jnp.sum(diff, axis=-1)                              # (bt,)

    bt = o_ref.shape[-1]
    o_ref[...] = total.reshape(1, 1, bt).astype(o_ref.dtype)    # lane-dense store


def _tpu_vmem_and_cores():
    """(VMEM bytes per TensorCore, TensorCores per chip) with safe fallbacks."""
    try:
        info = pltpu.get_tpu_info()
        vmem = int(info.vmem_capacity_bytes)
    except Exception:
        return 64 << 20, 1                       # conservative: v7x-sized VMEM, 1 core
    cores = None
    for attr in ("num_cores", "core_count", "tensorcore_count", "num_tensorcores"):
        v = getattr(info, attr, None)
        if isinstance(v, int) and v >= 1:
            cores = v
            break
    if cores is None:
        # v7x exposes 64 MiB VMEM per TC and has 2 TCs/chip; v5e/v6e: 128 MiB, 1 TC.
        cores = 2 if vmem <= (64 << 20) else 1
    return vmem, cores


def _pick_batch_tile(batch, dim, itemsize, vmem_bytes, num_cores):
    """Largest batch tile whose double-buffered inputs + f32 temporaries fit VMEM."""
    budget = min(int(vmem_bytes * 0.55), 48 << 20)   # ~35 MiB on v7x, 48 MiB on v5e/v6e
    # Per-row VMEM while one grid step is in flight:
    #   premise+consequence x 2 pipeline buffers x (2*dim) input elements
    # + ~16 per-element f32 temporaries for the elementwise chain (pre-fusion worst case)
    # + double-buffered f32 output element.
    per_row = 2 * 2 * 2 * dim * itemsize + 16 * dim * 4 + 2 * 4
    bt = int(budget // per_row)
    bt = max(16, min(4096, (bt // 16) * 16))
    if num_cores > 1:
        # v7x: keep >= num_cores grid steps so dimension_semantics=("parallel",)
        # can shard the batch axis across both TensorCores.
        per_core = -(-batch // num_cores)
        bt = min(bt, max(16, ((per_core + 15) // 16) * 16))
    if batch <= bt:
        return int(batch)        # single full-array block: always layout-legal, 1 step
    return int(bt)


def _vmem_limit(bt, dim, itemsize, vmem_bytes):
    """Explicit scoped-VMEM request sized to the chosen tile, capped per generation."""
    need = (2 * 2 * bt * 2 * dim * itemsize      # double-buffered premise/consequence blocks
            + 2 * bt * 4                         # double-buffered output block
            + 16 * bt * dim * 4                  # headroom for elementwise f32 temporaries
            + (2 << 20))                         # misc compiler scratch slack
    cap = min(int(vmem_bytes * 0.7), 100 << 20)
    return int(min(max(need, 32 << 20), cap))


def entailment(premise, consequence, *, batch_tile=None):
    """log P(consequence | premise) under soft-box embeddings. Inputs (B, 2*D)."""
    assert premise.shape == consequence.shape
    B, two_d = premise.shape
    assert two_d % 2 == 0
    dim = two_d // 2

    itemsize = jnp.dtype(premise.dtype).itemsize
    vmem_bytes, num_cores = _tpu_vmem_and_cores()
    if batch_tile is None:
        batch_tile = _pick_batch_tile(B, dim, itemsize, vmem_bytes, num_cores)
    else:
        batch_tile = int(min(batch_tile, B))
        if batch_tile < B:
            assert batch_tile % 8 == 0, "batch_tile must be a multiple of 8 (or >= batch)"

    num_tiles = pl.cdiv(B, batch_tile)           # last block may be partial (no padding)

    in_spec = pl.BlockSpec((batch_tile, two_d), lambda i: (i, 0))
    kernel = functools.partial(
        entailment_kernel, dim=dim, bf16_eup=(premise.dtype == jnp.bfloat16))

    out = pl.pallas_call(
        kernel,
        out_shape=jax.ShapeDtypeStruct((num_tiles, 1, batch_tile), jnp.float32),
        grid_spec=pltpu.PrefetchScalarGridSpec(
            num_scalar_prefetch=0,
            grid=(num_tiles,),
            in_specs=[in_spec, in_spec],
            out_specs=pl.BlockSpec((1, 1, batch_tile), lambda i: (i, 0, 0)),
        ),
        compiler_params=pltpu.CompilerParams(
            dimension_semantics=("parallel",),
            vmem_limit_bytes=_vmem_limit(batch_tile, dim, itemsize, vmem_bytes),
        ),
    )(premise, consequence)

    # (num_tiles, 1, batch_tile) -> (B, 1); rows >= B of the last partial tile are
    # undefined and discarded here (row-local math, so they never feed valid rows).
    return out.reshape(-1)[:B].reshape(B, 1)


def entailment_ref(premise, consequence):
    dim = premise.shape[-1] // 2
    pc, po = premise[:, :dim], premise[:, dim:]
    cc, co = consequence[:, :dim], consequence[:, dim:]
    p_min, p_max = pc - po, pc + po
    c_min, c_max = cc - co, cc + co
    i_min = jnp.maximum(p_min, c_min)
    i_max = jnp.minimum(p_max, c_max)

    def logvol(mn, mx):
        return jnp.sum(
            jnp.log(jax.nn.softplus((mx - mn) / TAU) * TAU + EPS),
            axis=-1, keepdims=True)

    return logvol(i_min, i_max) - logvol(p_min, p_max)


def _make_boxes(key, b, d, dtype=jnp.float32):
    k1, k2 = jax.random.split(key)
    prem = jax.random.normal(k1, (b, 2 * d), dtype=jnp.float32)
    cons = jax.random.normal(k2, (b, 2 * d), dtype=jnp.float32)
    # offsets (second half) are positive half-widths
    prem = prem.at[:, d:].set(jnp.abs(prem[:, d:]) + 0.1)
    cons = cons.at[:, d:].set(jnp.abs(cons[:, d:]) + 0.1)
    return prem.astype(dtype), cons.astype(dtype)


if __name__ == "__main__":
    key = jax.random.PRNGKey(0)
    k_a, k_b, k_c = jax.random.split(key, 3)

    # Primary test: batch 8, box dim 64 -> feature size 128, single full-array block.
    B, D = 8, 64
    premise, consequence = _make_boxes(k_a, B, D)
    out = jax.block_until_ready(entailment(premise, consequence))
    ref = entailment_ref(premise, consequence)
    assert out.shape == (B, 1)
    assert jnp.allclose(out, ref, atol=1e-4, rtol=1e-4), (out, ref)

    # Multi-tile test: non-divisible batch + explicit small tile exercises the
    # partial-last-block (unpadded) path.
    B2, D2 = 40, 64
    premise2, consequence2 = _make_boxes(k_b, B2, D2)
    out2 = jax.block_until_ready(entailment(premise2, consequence2, batch_tile=16))
    ref2 = entailment_ref(premise2, consequence2)
    assert out2.shape == (B2, 1)
    assert jnp.allclose(out2, ref2, atol=1e-4, rtol=1e-4), (out2, ref2)

    # bf16 smoke test: exercises the bf16-EUP softplus path (loose tolerance —
    # the correction exp runs in bf16 by design).
    B3, D3 = 24, 64
    premise3, consequence3 = _make_boxes(k_c, B3, D3, dtype=jnp.bfloat16)
    out3 = jax.block_until_ready(entailment(premise3, consequence3))
    ref3 = entailment_ref(premise3.astype(jnp.float32), consequence3.astype(jnp.float32))
    assert out3.shape == (B3, 1)
    assert bool(jnp.all(jnp.isfinite(out3)))
    assert jnp.allclose(out3, ref3, atol=0.3, rtol=0.0), (out3, ref3)

    print("KERNEL_OK")
</pallas_src>

<mosaic_0001>
module attributes {stable_mosaic.version = 11 : i64} {
  func.func @entailment_kernel(%arg0: i32, %arg1: memref<8x128xf32, #tpu.memory_space<vmem>>, %arg2: memref<8x128xf32, #tpu.memory_space<vmem>>, %arg3: memref<1x1x8xf32, #tpu.memory_space<vmem>>) attributes {dimension_semantics = [#tpu.dimension_semantics<parallel>], iteration_bounds = array<i64: 1>, scalar_prefetch = 0 : i64, scratch_operands = 0 : i64, tpu.core_type = #tpu.core_type<tc>, window_params = [{transform_indices = @transform_0, window_bounds = array<i64: 8, 128>}, {transform_indices = @transform_1, window_bounds = array<i64: 8, 128>}, {transform_indices = @transform_2, window_bounds = array<i64: 1, 1, 8>}]} {
    %c0 = arith.constant 0 : index
    %c0_0 = arith.constant 0 : index
    %0 = vector.load %arg1[%c0, %c0_0] : memref<8x128xf32, #tpu.memory_space<vmem>>, vector<8x128xf32>
    %c0_1 = arith.constant 0 : index
    %c0_2 = arith.constant 0 : index
    %1 = vector.load %arg2[%c0_1, %c0_2] : memref<8x128xf32, #tpu.memory_space<vmem>>, vector<8x128xf32>
    %2 = vector.extract_strided_slice %0 {offsets = [0, 0], sizes = [8, 64], strides = [1, 1]} : vector<8x128xf32> to vector<8x64xf32>
    %3 = vector.extract_strided_slice %0 {offsets = [0, 64], sizes = [8, 64], strides = [1, 1]} : vector<8x128xf32> to vector<8x64xf32>
    %4 = vector.extract_strided_slice %1 {offsets = [0, 0], sizes = [8, 64], strides = [1, 1]} : vector<8x128xf32> to vector<8x64xf32>
    %5 = vector.extract_strided_slice %1 {offsets = [0, 64], sizes = [8, 64], strides = [1, 1]} : vector<8x128xf32> to vector<8x64xf32>
    %6 = arith.subf %2, %3 : vector<8x64xf32>
    %7 = arith.addf %2, %3 : vector<8x64xf32>
    %8 = arith.subf %4, %5 : vector<8x64xf32>
    %9 = arith.addf %4, %5 : vector<8x64xf32>
    %10 = arith.maximumf %6, %8 : vector<8x64xf32>
    %11 = arith.minimumf %7, %9 : vector<8x64xf32>
    %12 = arith.subf %11, %10 : vector<8x64xf32>
    %13 = math.absf %12 : vector<8x64xf32>
    %cst = arith.constant 0.000000e+00 : f32
    %14 = vector.broadcast %cst : f32 to vector<8x64xf32>
    %15 = arith.subf %14, %13 : vector<8x64xf32>
    %16 = math.exp %15 : vector<8x64xf32>
    %17 = math.log1p %16 : vector<8x64xf32>
    %cst_3 = arith.constant 0.000000e+00 : f32
    %18 = vector.broadcast %cst_3 : f32 to vector<8x64xf32>
    %19 = arith.maximumf %12, %18 : vector<8x64xf32>
    %20 = arith.addf %19, %17 : vector<8x64xf32>
    %cst_4 = arith.constant 1.000000e-10 : f32
    %21 = vector.broadcast %cst_4 : f32 to vector<8x64xf32>
    %22 = arith.addf %20, %21 : vector<8x64xf32>
    %23 = math.log %22 : vector<8x64xf32>
    %24 = arith.subf %7, %6 : vector<8x64xf32>
    %25 = math.absf %24 : vector<8x64xf32>
    %cst_5 = arith.constant 0.000000e+00 : f32
    %26 = vector.broadcast %cst_5 : f32 to vector<8x64xf32>
    %27 = arith.subf %26, %25 : vector<8x64xf32>
    %28 = math.exp %27 : vector<8x64xf32>
    %29 = math.log1p %28 : vector<8x64xf32>
    %cst_6 = arith.constant 0.000000e+00 : f32
    %30 = vector.broadcast %cst_6 : f32 to vector<8x64xf32>
    %31 = arith.maximumf %24, %30 : vector<8x64xf32>
    %32 = arith.addf %31, %29 : vector<8x64xf32>
    %cst_7 = arith.constant 1.000000e-10 : f32
    %33 = vector.broadcast %cst_7 : f32 to vector<8x64xf32>
    %34 = arith.addf %32, %33 : vector<8x64xf32>
    %35 = math.log %34 : vector<8x64xf32>
    %36 = arith.subf %23, %35 : vector<8x64xf32>
    %cst_8 = arith.constant dense<0.000000e+00> : vector<8xf32>
    %37 = vector.multi_reduction <add>, %36, %cst_8 [1] : vector<8x64xf32> to vector<8xf32>
    %38 = vector.shape_cast %37 : vector<8xf32> to vector<1x1x8xf32>
    %c0_9 = arith.constant 0 : index
    %c0_10 = arith.constant 0 : index
    %c0_11 = arith.constant 0 : index
    %39 = vector.load %arg3[%c0_9, %c0_10, %c0_11] : memref<1x1x8xf32, #tpu.memory_space<vmem>>, vector<1x1x8xf32>
    tpu.vector_store %arg3[%c0_9, %c0_10, %c0_11], %38 {strides = array<i32>} : memref<1x1x8xf32, #tpu.memory_space<vmem>>, vector<1x1x8xf32>,
    return
  }
  func.func @transform_0(%arg0: i32) -> (i32, i32) {
    %c0_i32 = arith.constant 0 : i32
    %c0_i32_0 = arith.constant 0 : i32
    return %arg0, %c0_i32 : i32, i32
  }
  func.func @transform_1(%arg0: i32) -> (i32, i32) {
    %c0_i32 = arith.constant 0 : i32
    %c0_i32_0 = arith.constant 0 : i32
    return %arg0, %c0_i32 : i32, i32
  }
  func.func @transform_2(%arg0: i32) -> (i32, i32, i32) {
    %c0_i32 = arith.constant 0 : i32
    %c0_i32_0 = arith.constant 0 : i32
    %c0_i32_1 = arith.constant 0 : i32
    return %arg0, %c0_i32, %c0_i32_0 : i32, i32, i32
  }
}

</mosaic_0001>

<llo_original>
// kernel: tpu_custom_call.1
$region0: #{tpu_custom_call.1}
  #allocation0 [shape = 'u32[]', space=smem, size = 0x4, offset = 0x4, fixed_abs, tag = 'smem constant byte address 0x4 - core index']
  #allocation1 [shape = 'u32[72,128]{1,0:T(1,128)}', space=vmem, size = 0x9000, scoped, tag = 'internal scratch']
  %s0 = inlined_call_operand.hbm [shape: f32[8,128], index: 0, kind: input, shape index: {}]
  %s1 = inlined_call_operand.hbm [shape: f32[8,128], index: 1, kind: input, shape index: {}]
  %s2 = inlined_call_operand.hbm [shape: f32[1,1,8], index: 2, kind: output, shape index: {}]
  %s3 = sld [smem:[#allocation0]]
  $region26: #{tpu_custom_call.1} parent=0
    _
  %s5 = ssub.s32 1, %s3
  %s6 = scalar_select 0, %s5, %s3
  $region1: #{tpu_custom_call.1} parent=0
    #allocation2 [shape = 'u8[4096]{0}', space=vmem, size = 0x1000, scoped, tag = 'input window, operand 0, single buffered']
    #allocation3 [shape = 's32[1]{0}', space=sflag, size = 0x4, scoped, tag = 'scoped memory for tpu_custom_call.1']
    #allocation4 [shape = 's32[1]{0}', space=sflag, size = 0x4, scoped, tag = 'scoped memory for tpu_custom_call.1']
    #allocation5 [shape = 'u8[4096]{0}', space=vmem, size = 0x1000, scoped, tag = 'input window, operand 1, single buffered']
    #allocation6 [shape = 's32[1]{0}', space=sflag, size = 0x4, scoped, tag = 'scoped memory for tpu_custom_call.1']
    #allocation7 [shape = 'u8[512]{0}', space=vmem, size = 0x400, scoped, tag = 'output window, operand 0, single buffered']
    %7 = vsyncpa [#allocation3], 0
    %8 = vsyncpa [#allocation6], 0
    %9 = vsyncpa [#allocation4], 0
    // Predicated region
    $region2: #{tpu_custom_call.1} parent=1 // pred_check
      _
    $region3: #{tpu_custom_call.1} parent=1 // pred_check_branch
      %11 = sbr.rel (0) target = $region5
    $region4: #{tpu_custom_call.1} parent=1 // pred_region
      %13 = vsyncadd [#allocation3], 0
      %s15 = sshll.u32 %s0, 4
      %s16 = int_to_ptr.hbm [resolvable:$true] %s15
      %s17 = sshll.u32 [#allocation2], 4
      %s18 = int_to_ptr.vmem [resolvable:$true] %s17
      %20 = dma.hbm_to_vmem [thread:$0]  %s16, 128, %s18, [#allocation3]
    $region5: #{tpu_custom_call.1} parent=1 // pred_fallthru
      _
    // Predicated region
    $region6: #{tpu_custom_call.1} parent=1 // pred_check
      _
    $region7: #{tpu_custom_call.1} parent=1 // pred_check_branch
      %22 = sbr.rel (0) target = $region9
    $region8: #{tpu_custom_call.1} parent=1 // pred_region
      %24 = vsyncadd [#allocation6], 0
      %s26 = sshll.u32 %s1, 4
      %s27 = int_to_ptr.hbm [resolvable:$true] %s26
      %s28 = sshll.u32 [#allocation5], 4
      %s29 = int_to_ptr.vmem [resolvable:$true] %s28
      %31 = dma.hbm_to_vmem [thread:$0]  %s27, 128, %s29, [#allocation6]
    $region9: #{tpu_custom_call.1} parent=1 // pred_fallthru
      _
    // Predicated region
    $region10: #{tpu_custom_call.1} parent=1 // pred_check
      _
    $region11: #{tpu_custom_call.1} parent=1 // pred_check_branch
      %33 = sbr.rel (0) target = $region13
    $region12: #{tpu_custom_call.1} parent=1 // pred_region
      %35 = dma.done [#allocation3], 128
    $region13: #{tpu_custom_call.1} parent=1 // pred_fallthru
      _
    // Predicated region
    $region14: #{tpu_custom_call.1} parent=1 // pred_check
      _
    $region15: #{tpu_custom_call.1} parent=1 // pred_check_branch
      %37 = sbr.rel (0) target = $region17
    $region16: #{tpu_custom_call.1} parent=1 // pred_region
      %39 = dma.done [#allocation6], 128
    $region17: #{tpu_custom_call.1} parent=1 // pred_fallthru
      _
    %v40 = vld [vmem:[#allocation2] sm:$0xff]
    %v41 = vld [vmem:[#allocation5] sm:$0xff]
    %43 = vrot.lane.b32.xlu0 %v40, 64
    %v44 = vpop.permute.xlu0 %43
    %v46 = vsub.f32 %v40, %v44
    %v47 = vadd.f32 %v40, %v44
    %49 = vrot.lane.b32.xlu0 %v41, 64
    %v50 = vpop.permute.xlu0 %49
    %v52 = vsub.f32 %v41, %v50
    %v53 = vadd.f32 %v41, %v50
    %v54 = vmax.f32 %v46, %v52
    %v55 = vmin.f32 %v47, %v53
    %v56 = vsub.f32 %v55, %v54
    %v57 = vand.u32 2147483647, %v56
    %v58 = vsub.f32 0.0, %v57
    %v59 = vmul.f32 %v58, 1.442695
    %v60 = vpow.pop %v59
    %v61 = vadd.f32 %v60, 1.0
    %v62 = vlog2.pop %v61
    %v63 = vmul.f32 %v62, 0.6931472
    %v64 = vmul.f32 -0.5, %v60
    %v65 = vadd.f32 %v64, 1.0
    %v66 = vmul.f32 %v65, %v60
    %v67 = vand.u32 2147483647, %v60
    %vm68 = vcmp.lt.f32.partialorder %v67, 0.0004427343
    %v69 = vsel %vm68, %v66, %v63
    %v70 = vmax.f32 %v56, 0.0
    %v71 = vadd.f32 %v70, %v69
    %v72 = vadd.f32 %v71, 1e-10
    %v73 = vlog2.pop %v72
    %v74 = vmul.f32 %v73, 0.6931472
    %v75 = vsub.f32 %v47, %v46
    %v76 = vand.u32 2147483647, %v75
    %v77 = vsub.f32 0.0, %v76
    %v78 = vmul.f32 %v77, 1.442695
    %v79 = vpow.pop %v78
    %v80 = vadd.f32 %v79, 1.0
    %v81 = vlog2.pop %v80
    %v82 = vmul.f32 %v81, 0.6931472
    %v83 = vmul.f32 -0.5, %v79
    %v84 = vadd.f32 %v83, 1.0
    %v85 = vmul.f32 %v84, %v79
    %v86 = vand.u32 2147483647, %v79
    %vm87 = vcmp.lt.f32.partialorder %v86, 0.0004427343
    %v88 = vsel %vm87, %v85, %v82
    %v89 = vmax.f32 %v75, 0.0
    %v90 = vadd.f32 %v89, %v88
    %v91 = vadd.f32 %v90, 1e-10
    %v92 = vlog2.pop %v91
    %v93 = vmul.f32 %v92, 0.6931472
    %v94 = vsub.f32 %v74, %v93
    %vm95 = vcmask 523264
    %v96 = vsel %vm95, %v94, 0.0
    %97 = vadd.xlane.f32.xlu0 %v96
    %v98 = vpop.xlane.xlu0 %97
    %v100 = vlaneseq
    %v101 = vand.u32 %v100, 127
    %v102 = vperm.slane %v98, %v101
    %vm104 = vcmask 57344
    %105 = vst.msk [vmem:[#allocation7] sm:$0x1] %vm104, %v102
    // Predicated region
    $region18: #{tpu_custom_call.1} parent=1 // pred_check
      _
    $region19: #{tpu_custom_call.1} parent=1 // pred_check_branch
      %107 = sbr.rel (0) target = $region21
    $region20: #{tpu_custom_call.1} parent=1 // pred_region
      %109 = vsyncadd [#allocation4], 0
      %s111 = sshll.u32 [#allocation7], 4
      %s112 = int_to_ptr.vmem [resolvable:$true] %s111
      %s113 = sshll.u32 %s2, 4
      %s114 = int_to_ptr.hbm [resolvable:$true] %s113
      %116 = dma.vmem_to_hbm [thread:$0]  %s112, 16, %s114, [#allocation4]
    $region21: #{tpu_custom_call.1} parent=1 // pred_fallthru
      _
    // Predicated region
    $region22: #{tpu_custom_call.1} parent=1 // pred_check
      _
    $region23: #{tpu_custom_call.1} parent=1 // pred_check_branch
      %118 = sbr.rel (0) target = $region25
    $region24: #{tpu_custom_call.1} parent=1 // pred_region
      %120 = dma.done [#allocation4], 16
    $region25: #{tpu_custom_call.1} parent=1 // pred_fallthru
      _
    %121 = vsyncpa [#allocation3], 1
    %122 = vsyncpa [#allocation6], 1
    %123 = vsyncpa [#allocation4], 1

</llo_original>
